<compile_context>
chip_gen: v7x
topology: tpu7x:2x2x1
jax: 0.10.0
libtpu: 0.0.40
codegen_flags: <defaults>
</compile_context>

<pallas_src>
import functools

import jax
import jax.numpy as jnp
from jax.experimental import pallas as pl
from jax.experimental.pallas import tpu as pltpu


def view(x, *shape):
    """PyTorch `View(*shape)` forward: input.view(-1, *shape).
    A pure metadata reshape — no data movement, so no Pallas kernel is used."""
    return jnp.reshape(x, (-1,) + tuple(shape))


def _round_up(v, m):
    return ((v + m - 1) // m) * m


# ---------------------------------------------------------------------------
# Pallas kernel: one wide matmul + square/rank-sum + bias per M tile.
# ---------------------------------------------------------------------------
def _icq_kernel(p_ref, wf_ref, b_ref, o_ref, *, rank, cpad):
    """p_ref:  [tm, K_pad]             im2col patch tile
       wf_ref: [K_pad, (rank+1)*cpad]  fused weights: [linear | quad r=0 | ...]
       b_ref:  [1, cpad]               zero-padded bias
       o_ref:  [tm, cpad]              lane-dense output tile."""
    acc = jnp.dot(p_ref[...], wf_ref[...], preferred_element_type=jnp.float32)
    out = acc[:, :cpad] + b_ref[...]                 # linear conv term + bias
    for r in range(rank):                            # convex quadratic term
        t = acc[:, (r + 1) * cpad:(r + 2) * cpad]    # 128-aligned static slice
        out = out + t * t
    o_ref[...] = out.astype(o_ref.dtype)


def conv2d_convex_quadratic(x, w_quad, w_lin, bias, *, rank, stride=1,
                            padding=0, tm=512, matmul_dtype=None):
    """x: [N, Cin, H, W] (NCHW).  w_quad: [Cout*rank, Cin, KH, KW] (OIHW,
    channel index = o*rank + r).  w_lin: [Cout, Cin, KH, KW].  bias: [Cout].
    Returns [N, Cout, OH, OW] (NCHW), dtype of x (f32 accumulation inside)."""
    N, Cin, H, W = x.shape
    CoutR, _, KH, KW = w_quad.shape
    Cout = CoutR // rank
    OH = (H + 2 * padding - KH) // stride + 1
    OW = (W + 2 * padding - KW) // stride + 1
    K = Cin * KH * KW
    M = N * OH * OW

    cpad = _round_up(Cout, 128)          # lane-dense output channels
    K_pad = _round_up(K, 128)            # lane-aligned contraction dim
    nf = (rank + 1) * cpad               # fused weight output width

    in_dtype = matmul_dtype if matmul_dtype is not None else x.dtype
    bytes_in = jnp.dtype(in_dtype).itemsize
    bytes_out = jnp.dtype(x.dtype).itemsize

    # ---- M tile selection: big, but >=2 grid steps and within VMEM budget --
    tm = max(8, min(tm, _round_up(max((M + 1) // 2, 8), 8)))

    def _need(t):
        return (2 * t * K_pad * bytes_in          # double-buffered patch tile
                + 2 * K_pad * nf * bytes_in       # fused weight (2 bufs)
                + 2 * cpad * 4                    # bias
                + 2 * t * cpad * bytes_out        # double-buffered output tile
                + t * nf * 4 + t * cpad * 4)      # in-kernel f32 intermediates

    VMEM_BUDGET = 48 << 20                        # conservative for v7x (64 MiB)
    while tm > 64 and _need(tm) > VMEM_BUDGET:
        tm //= 2
    Mp = _round_up(M, tm)
    vmem_limit = int(min(max(_need(tm) + (8 << 20), 32 << 20), 56 << 20))

    # ---- im2col via XLA-fusible patch extraction (NHWC; never transposes the
    #      9x-blown-up patch tensor). Feature idx = c*KH*KW + kh*KW + kw, which
    #      matches PyTorch's weight.reshape(Cout, -1) ordering. ----------------
    x_nhwc = jnp.transpose(x, (0, 2, 3, 1))
    patches = jax.lax.conv_general_dilated_patches(
        x_nhwc, filter_shape=(KH, KW), window_strides=(stride, stride),
        padding=[(padding, padding), (padding, padding)],
        dimension_numbers=('NHWC', 'HWIO', 'NHWC'),
        precision=jax.lax.Precision.HIGHEST)         # exact extraction
    patches = patches.reshape(M, K)
    patches = jnp.pad(patches, ((0, Mp - M), (0, K_pad - K)))
    patches = patches.astype(in_dtype)

    # ---- fused weight [K_pad, (rank+1)*cpad]: [linear | quad r=0 | ... ] ----
    wl = w_lin.reshape(Cout, K).T                     # [K, Cout]
    wq = w_quad.reshape(Cout, rank, K)                # channel = o*rank + r

    def _pad2(w):                                     # [K, Cout] -> [K_pad, cpad]
        return jnp.pad(w, ((0, K_pad - K), (0, cpad - Cout)))

    slabs = [_pad2(wl)] + [_pad2(wq[:, r, :].T) for r in range(rank)]
    wf = jnp.concatenate(slabs, axis=1).astype(in_dtype)       # [K_pad, nf]
    b2 = jnp.pad(bias, (0, cpad - Cout)).reshape(1, cpad).astype(jnp.float32)

    grid = (Mp // tm,)
    out = pl.pallas_call(
        functools.partial(_icq_kernel, rank=rank, cpad=cpad),
        out_shape=jax.ShapeDtypeStruct((Mp, cpad), x.dtype),
        grid_spec=pltpu.PrefetchScalarGridSpec(
            num_scalar_prefetch=0,
            grid=grid,
            in_specs=[
                pl.BlockSpec((tm, K_pad), lambda i: (i, 0)),
                # grid-invariant operands (constant index_map -> fetched once)
                pl.BlockSpec((K_pad, nf), lambda i: (0, 0)),
                pl.BlockSpec((1, cpad), lambda i: (0, 0)),
            ],
            out_specs=pl.BlockSpec((tm, cpad), lambda i: (i, 0)),
        ),
        compiler_params=pltpu.CompilerParams(
            dimension_semantics=("parallel",),
            vmem_limit_bytes=vmem_limit),
    )(patches, wf, b2)

    # keep the module's NCHW interface; only the small Cout-channel output is
    # transposed (the 9x patch tensor never is).
    out = out[:M, :Cout].reshape(N, OH, OW, Cout).transpose(0, 3, 1, 2)
    return out


def _reference(x, w_quad, w_lin, bias, rank, stride, padding):
    """Pure-JAX reference matching the PyTorch forward exactly."""
    dn = jax.lax.conv_dimension_numbers(x.shape, w_quad.shape,
                                        ('NCHW', 'OIHW', 'NCHW'))
    q = jax.lax.conv_general_dilated(
        x, w_quad, (stride, stride), [(padding, padding)] * 2,
        dimension_numbers=dn)
    q = q ** 2
    n, c, h, w = q.shape
    q = q.reshape(n, c // rank, rank, h, w).sum(2)
    lin = jax.lax.conv_general_dilated(
        x, w_lin, (stride, stride), [(padding, padding)] * 2,
        dimension_numbers=dn)
    return q + lin + bias.reshape(1, -1, 1, 1)


if __name__ == "__main__":
    # Small shapes consistent with the module.
    N, Cin, H, W = 2, 4, 16, 16
    Cout, rank = 8, 4
    KH = KW = 3
    stride, padding = 1, 1

    key = jax.random.PRNGKey(0)
    k1, k2, k3, k4 = jax.random.split(key, 4)
    x = jax.random.normal(k1, (N, Cin, H, W), dtype=jnp.float32)
    w_quad = 0.1 * jax.random.normal(k2, (Cout * rank, Cin, KH, KW), dtype=jnp.float32)
    w_lin = 0.1 * jax.random.normal(k3, (Cout, Cin, KH, KW), dtype=jnp.float32)
    bias = 0.1 * jax.random.normal(k4, (Cout,), dtype=jnp.float32)

    # `View` module semantics (pure reshape, no kernel needed).
    v = view(x, Cin * H * W)
    assert v.shape == (N, Cin * H * W)
    assert jnp.array_equal(v, x.reshape(N, -1))

    ref = _reference(x, w_quad, w_lin, bias, rank, stride, padding)

    # f32 path (strict check).
    f32_fn = jax.jit(functools.partial(conv2d_convex_quadratic, rank=rank,
                                       stride=stride, padding=padding))
    out = jax.block_until_ready(f32_fn(x, w_quad, w_lin, bias))
    assert out.shape == ref.shape, (out.shape, ref.shape)
    assert jnp.allclose(out, ref, rtol=1e-4, atol=1e-4), "f32 mismatch vs reference"

    # bf16-matmul path (v6e/v7x MXU peak; f32 accumulation) — loose tolerance.
    bf16_fn = jax.jit(functools.partial(conv2d_convex_quadratic, rank=rank,
                                        stride=stride, padding=padding,
                                        matmul_dtype=jnp.bfloat16))
    out_bf16 = jax.block_until_ready(bf16_fn(x, w_quad, w_lin, bias))
    assert out_bf16.shape == ref.shape
    assert jnp.allclose(out_bf16, ref, rtol=5e-2, atol=1e-1), "bf16 mismatch vs reference"

    print("KERNEL_OK")
</pallas_src>

<mosaic_0001>
module attributes {stable_mosaic.version = 11 : i64} {
  func.func @_icq_kernel(%arg0: i32, %arg1: memref<256x128xf32, #tpu.memory_space<vmem>>, %arg2: memref<128x640xf32, #tpu.memory_space<vmem>>, %arg3: memref<1x128xf32, #tpu.memory_space<vmem>>, %arg4: memref<256x128xf32, #tpu.memory_space<vmem>>) attributes {dimension_semantics = [#tpu.dimension_semantics<parallel>], iteration_bounds = array<i64: 2>, scalar_prefetch = 0 : i64, scratch_operands = 0 : i64, tpu.core_type = #tpu.core_type<tc>, window_params = [{transform_indices = @transform_0, window_bounds = array<i64: 256, 128>}, {pipeline_mode = #tpu.pipeline_mode<synchronous>, transform_indices = @transform_1, window_bounds = array<i64: 128, 640>}, {pipeline_mode = #tpu.pipeline_mode<synchronous>, transform_indices = @transform_2, window_bounds = array<i64: 1, 128>}, {transform_indices = @transform_3, window_bounds = array<i64: 256, 128>}]} {
    %c0 = arith.constant 0 : index
    %c0_0 = arith.constant 0 : index
    %0 = vector.load %arg1[%c0, %c0_0] : memref<256x128xf32, #tpu.memory_space<vmem>>, vector<256x128xf32>
    %c0_1 = arith.constant 0 : index
    %c0_2 = arith.constant 0 : index
    %1 = vector.load %arg2[%c0_1, %c0_2] : memref<128x640xf32, #tpu.memory_space<vmem>>, vector<128x640xf32>
    %cst = arith.constant dense<0.000000e+00> : vector<256x640xf32>
    %2 = tpu.matmul %0, %1, %cst {dimension_numbers = #tpu.dot_dimension_numbers<[1], [0], [0], [1], [0, 0, 1, 1], [], []>} : vector<256x128xf32>, vector<128x640xf32>, vector<256x640xf32> -> vector<256x640xf32>
    %3 = vector.extract_strided_slice %2 {offsets = [0, 0], sizes = [256, 128], strides = [1, 1]} : vector<256x640xf32> to vector<256x128xf32>
    %c0_3 = arith.constant 0 : index
    %c0_4 = arith.constant 0 : index
    %4 = vector.load %arg3[%c0_3, %c0_4] : memref<1x128xf32, #tpu.memory_space<vmem>>, vector<1x128xf32>
    %5 = vector.broadcast %4 : vector<1x128xf32> to vector<256x128xf32>
    %6 = arith.addf %3, %5 : vector<256x128xf32>
    %7 = vector.extract_strided_slice %2 {offsets = [0, 128], sizes = [256, 128], strides = [1, 1]} : vector<256x640xf32> to vector<256x128xf32>
    %8 = arith.mulf %7, %7 : vector<256x128xf32>
    %9 = arith.addf %6, %8 : vector<256x128xf32>
    %10 = vector.extract_strided_slice %2 {offsets = [0, 256], sizes = [256, 128], strides = [1, 1]} : vector<256x640xf32> to vector<256x128xf32>
    %11 = arith.mulf %10, %10 : vector<256x128xf32>
    %12 = arith.addf %9, %11 : vector<256x128xf32>
    %13 = vector.extract_strided_slice %2 {offsets = [0, 384], sizes = [256, 128], strides = [1, 1]} : vector<256x640xf32> to vector<256x128xf32>
    %14 = arith.mulf %13, %13 : vector<256x128xf32>
    %15 = arith.addf %12, %14 : vector<256x128xf32>
    %16 = vector.extract_strided_slice %2 {offsets = [0, 512], sizes = [256, 128], strides = [1, 1]} : vector<256x640xf32> to vector<256x128xf32>
    %17 = arith.mulf %16, %16 : vector<256x128xf32>
    %18 = arith.addf %15, %17 : vector<256x128xf32>
    %c0_5 = arith.constant 0 : index
    %c0_6 = arith.constant 0 : index
    %19 = vector.load %arg4[%c0_5, %c0_6] : memref<256x128xf32, #tpu.memory_space<vmem>>, vector<256x128xf32>
    tpu.vector_store %arg4[%c0_5, %c0_6], %18 {strides = array<i32>} : memref<256x128xf32, #tpu.memory_space<vmem>>, vector<256x128xf32>,
    return
  }
  func.func @transform_0(%arg0: i32) -> (i32, i32) {
    %c0_i32 = arith.constant 0 : i32
    %c0_i32_0 = arith.constant 0 : i32
    return %arg0, %c0_i32 : i32, i32
  }
  func.func @transform_1(%arg0: i32) -> (i32, i32) {
    %c0_i32 = arith.constant 0 : i32
    %c0_i32_0 = arith.constant 0 : i32
    %c0_i32_1 = arith.constant 0 : i32
    return %c0_i32, %c0_i32_0 : i32, i32
  }
  func.func @transform_2(%arg0: i32) -> (i32, i32) {
    %c0_i32 = arith.constant 0 : i32
    %c0_i32_0 = arith.constant 0 : i32
    %c0_i32_1 = arith.constant 0 : i32
    return %c0_i32, %c0_i32_0 : i32, i32
  }
  func.func @transform_3(%arg0: i32) -> (i32, i32) {
    %c0_i32 = arith.constant 0 : i32
    %c0_i32_0 = arith.constant 0 : i32
    return %arg0, %c0_i32 : i32, i32
  }
}

</mosaic_0001>

<llo_original>
// kernel: conv2d_convex_quadratic.1
$region0: #{conv2d_convex_quadratic.1}
  #allocation0 [shape = 'u32[]', space=smem, size = 0x4, offset = 0x4, fixed_abs, tag = 'smem constant byte address 0x4 - core index']
  #allocation1 [shape = 'u32[144,128]{1,0:T(1,128)}', space=vmem, size = 0x12000, scoped, tag = 'internal scratch']
  %s0 = inlined_call_operand.vmem [shape: f32[512,128], index: 0, kind: input, shape index: {}]
  %s1 = inlined_call_operand.vmem [shape: f32[128,640], index: 1, kind: input, shape index: {}]
  %s2 = inlined_call_operand.vmem [shape: f32[1,128], index: 2, kind: input, shape index: {}]
  %s3 = inlined_call_operand.vmem [shape: f32[512,128], index: 3, kind: output, shape index: {}]
  %s4 = sld [smem:[#allocation0]]
  $region45: #{conv2d_convex_quadratic.1} parent=0
    _
  %s6 = ssub.s32 1, %s4
  %s7 = scalar_select 0, %s6, %s4
  loop: start=0, step=1, limit=4
  $region2: #{conv2d_convex_quadratic.1} parent=0 // loop_pre_header
    _
  $region3: #{conv2d_convex_quadratic.1} parent=0 // loop_header
    %s9 = sphi 0, %s13
    %p10 = scmp.ge.s32.totalorder %s9, 4
    %s19 = sphi 0, %s21
    %s22 = sphi 0, %s19
    %s23 = sphi 0, %s22
    %s39 = sphi 0, %s23
    %s43 = sphi 0, %s43
    %s45 = sphi 0, %s43
    %s46 = sphi 0, %s45
    %s60 = sphi 0, %s46
    %s64 = sphi 0, %s64
    %s66 = sphi 0, %s64
    %s67 = sphi 0, %s66
    %s81 = sphi 0, %s67
    %s87 = sphi 0, %s89
    %s90 = sphi 0, %s87
    %s91 = sphi 0, %s90
    %s107 = sphi 0, %s91
  $region4: #{conv2d_convex_quadratic.1} parent=0 // loop_header_branch
    %12 = sbr.rel (%p10) target = $region8
  $region5: #{conv2d_convex_quadratic.1} parent=0 // loop_body
    %s14 = ssub.s32 %s9, 1
    %s15 = ssub.s32 %s9, 2
    %s16 = sadd.s32 %s9, 1
    %s17 = ssub.s32 %s9, %s16
    %p18 = scmp.eq.s32.totalorder %s17, 0
    %s20 = sadd.s32 %s19, 1
    %s21 = scalar_select %p18, %s19, %s20
    %p24 = pneg %p18
    %p25 = scmp.eq.s32.totalorder %s9, 1
    %p26 = por %p24, %p25
    %p27 = scmp.ne.s32.totalorder %s19, %s22
    %p28 = scmp.eq.s32.totalorder %s9, 0
    %p29 = por %p27, %p28
    %p30 = scmp.ne.s32.totalorder %s19, %s22
    %p31 = scmp.eq.s32.totalorder %s14, 1
    %p32 = por %p30, %p31
    %p33 = scmp.ne.s32.totalorder %s22, %s23
    %p34 = scmp.eq.s32.totalorder %s14, 0
    %p35 = por %p33, %p34
    %p36 = scmp.ne.s32.totalorder %s22, %s23
    %p37 = scmp.eq.s32.totalorder %s15, 1
    %p38 = por %p36, %p37
    %p40 = scmp.ne.s32.totalorder %s23, %s39
    %p41 = scmp.eq.s32.totalorder %s15, 0
    %p42 = por %p40, %p41
    %s44 = sadd.s32 %s43, 1
    %p47 = scmp.eq.s32.totalorder %s9, 1
    %p48 = scmp.ne.s32.totalorder %s43, %s45
    %p49 = scmp.eq.s32.totalorder %s9, 0
    %p50 = por %p48, %p49
    %p51 = scmp.ne.s32.totalorder %s43, %s45
    %p52 = scmp.eq.s32.totalorder %s14, 1
    %p53 = por %p51, %p52
    %p54 = scmp.ne.s32.totalorder %s45, %s46
    %p55 = scmp.eq.s32.totalorder %s14, 0
    %p56 = por %p54, %p55
    %p57 = scmp.ne.s32.totalorder %s45, %s46
    %p58 = scmp.eq.s32.totalorder %s15, 1
    %p59 = por %p57, %p58
    %p61 = scmp.ne.s32.totalorder %s46, %s60
    %p62 = scmp.eq.s32.totalorder %s15, 0
    %p63 = por %p61, %p62
    %s65 = sadd.s32 %s64, 1
    %p68 = scmp.eq.s32.totalorder %s9, 1
    %p69 = scmp.ne.s32.totalorder %s64, %s66
    %p70 = scmp.eq.s32.totalorder %s9, 0
    %p71 = por %p69, %p70
    %p72 = scmp.ne.s32.totalorder %s64, %s66
    %p73 = scmp.eq.s32.totalorder %s14, 1
    %p74 = por %p72, %p73
    %p75 = scmp.ne.s32.totalorder %s66, %s67
    %p76 = scmp.eq.s32.totalorder %s14, 0
    %p77 = por %p75, %p76
    %p78 = scmp.ne.s32.totalorder %s66, %s67
    %p79 = scmp.eq.s32.totalorder %s15, 1
    %p80 = por %p78, %p79
    %p82 = scmp.ne.s32.totalorder %s67, %s81
    %p83 = scmp.eq.s32.totalorder %s15, 0
    %p84 = por %p82, %p83
    %s85 = ssub.s32 %s9, %s16
    %p86 = scmp.eq.s32.totalorder %s85, 0
    %s88 = sadd.s32 %s87, 1
    %s89 = scalar_select %p86, %s87, %s88
    %p92 = pneg %p86
    %p93 = scmp.eq.s32.totalorder %s9, 1
    %p94 = por %p92, %p93
    %p95 = scmp.ne.s32.totalorder %s87, %s90
    %p96 = scmp.eq.s32.totalorder %s9, 0
    %p97 = por %p95, %p96
    %p98 = scmp.ne.s32.totalorder %s87, %s90
    %p99 = scmp.eq.s32.totalorder %s14, 1
    %p100 = por %p98, %p99
    %p101 = scmp.ne.s32.totalorder %s90, %s91
    %p102 = scmp.eq.s32.totalorder %s14, 0
    %p103 = por %p101, %p102
    %p104 = scmp.ne.s32.totalorder %s90, %s91
    %p105 = scmp.eq.s32.totalorder %s15, 1
    %p106 = por %p104, %p105
    %p108 = scmp.ne.s32.totalorder %s91, %s107
    %p109 = scmp.eq.s32.totalorder %s15, 0
    %p110 = por %p108, %p109
    %p111 = scmp.le.s32.totalorder 1, %s9
    %p112 = scmp.lt.s32.totalorder %s9, 3
    %p113 = pnand %p111, %p112
    %p114 = pneg %p113
    // Predicated region
    $region9: #{conv2d_convex_quadratic.1} parent=5 // pred_check
      _
    $region10: #{conv2d_convex_quadratic.1} parent=5 // pred_check_branch
      %116 = sbr.rel (%p113) target = $region12
    $region11: #{conv2d_convex_quadratic.1} parent=5 // pred_region
      %s117 = ssub.s32 %s9, 1
      // Predicated region
      $region13: #{conv2d_convex_quadratic.1} parent=11 // pred_check
        %p118 = pneg %p56
      $region14: #{conv2d_convex_quadratic.1} parent=11 // pred_check_branch
        %120 = sbr.rel (%p118) target = $region16
      $region15: #{conv2d_convex_quadratic.1} parent=11 // pred_region
        _
      $region16: #{conv2d_convex_quadratic.1} parent=11 // pred_fallthru
        _
      // Predicated region
      $region17: #{conv2d_convex_quadratic.1} parent=11 // pred_check
        %p121 = pneg %p77
      $region18: #{conv2d_convex_quadratic.1} parent=11 // pred_check_branch
        %123 = sbr.rel (%p121) target = $region20
      $region19: #{conv2d_convex_quadratic.1} parent=11 // pred_region
        _
      $region20: #{conv2d_convex_quadratic.1} parent=11 // pred_fallthru
        _
    $region12: #{conv2d_convex_quadratic.1} parent=5 // pred_fallthru
      _
    %p124 = scmp.lt.s32.totalorder %s9, 2
    // Predicated region
    $region21: #{conv2d_convex_quadratic.1} parent=5 // pred_check
      %p125 = pneg %p124
    $region22: #{conv2d_convex_quadratic.1} parent=5 // pred_check_branch
      %127 = sbr.rel (%p125) target = $region24
    $region23: #{conv2d_convex_quadratic.1} parent=5 // pred_region
      // Predicated region
      $region25: #{conv2d_convex_quadratic.1} parent=23 // pred_check
        %p128 = pneg %p29
      $region26: #{conv2d_convex_quadratic.1} parent=23 // pred_check_branch
        %130 = sbr.rel (%p128) target = $region28
      $region27: #{conv2d_convex_quadratic.1} parent=23 // pred_region
        %s131 = smul.u32 32, %s9
        %p132 = scmp.lt.s32.totalorder %s131, 63
        %s133 = scalar_select %p132, %s131, 63
        %s134 = smul.addr %s133, 8
        %s135 = scalar_lea.vmem %s0, %s134
        %s136 = smul.u32 32, %s9
      $region28: #{conv2d_convex_quadratic.1} parent=23 // pred_fallthru
        _
    $region24: #{conv2d_convex_quadratic.1} parent=5 // pred_fallthru
      _
    %p137 = scmp.le.s32.totalorder 1, %s9
    %p138 = scmp.lt.s32.totalorder %s9, 3
    %p139 = pnand %p137, %p138
    %p140 = pneg %p139
    // Predicated region
    $region29: #{conv2d_convex_quadratic.1} parent=5 // pred_check
      _
    $region30: #{conv2d_convex_quadratic.1} parent=5 // pred_check_branch
      %142 = sbr.rel (%p139) target = $region32
    $region31: #{conv2d_convex_quadratic.1} parent=5 // pred_region
      %s143 = ssub.s32 %s9, 1
      %s144 = smul.u32 32, %s14
      %p145 = scmp.lt.s32.totalorder %s144, 63
      %s146 = scalar_select %p145, %s144, 63
      %s147 = smul.addr %s146, 8
      %s148 = scalar_lea.vmem %s0, %s147
      %p149 = pneg %p35
      %p150 = pneg %p32
      %p151 = pneg %p56
      %p152 = pneg %p53
      %p153 = pneg %p77
      %p154 = pneg %p74
      %p155 = pneg %p103
      %p156 = pneg %p100
      %s157 = smul.u32 32, %s14
      %p158 = scmp.lt.s32.totalorder %s157, 63
      %s159 = scalar_select %p158, %s157, 63
      %s160 = smul.addr %s159, 8
      %s161 = scalar_lea.vmem %s3, %s160
      %s162 = smul.u32 32, %s14
      %p163 = scmp.lt.s32.totalorder %s162, 63
      %s164 = scalar_select %p163, %s162, 63
      %s165 = smul.addr %s164, 8
      %s166 = scalar_lea.vmem %s0, %s165
      %s167 = smul.u32 32, %s14
      %s168 = smul.u32 32, %s14
      %p169 = scmp.lt.s32.totalorder %s168, 63
      %s170 = scalar_select %p169, %s168, 63
      %s171 = smul.addr %s170, 8
      %s172 = scalar_lea.vmem %s3, %s171
      %s173 = smul.u32 32, %s14
      %v174 = vld [vmem:[%s166] sm:$0xff]
      %v175 = vld [vmem:[%s166 + $0x8] sm:$0xff]
      %v176 = vld [vmem:[%s166 + $0x10] sm:$0xff]
      %v177 = vld [vmem:[%s166 + $0x18] sm:$0xff]
      %v178 = vld [vmem:[%s166 + $0x20] sm:$0xff]
      %v179 = vld [vmem:[%s166 + $0x28] sm:$0xff]
      %v180 = vld [vmem:[%s166 + $0x30] sm:$0xff]
      %v181 = vld [vmem:[%s166 + $0x38] sm:$0xff]
      %v182 = vld [vmem:[%s166 + $0x40] sm:$0xff]
      %v183 = vld [vmem:[%s166 + $0x48] sm:$0xff]
      %v184 = vld [vmem:[%s166 + $0x50] sm:$0xff]
      %v185 = vld [vmem:[%s166 + $0x58] sm:$0xff]
      %v186 = vld [vmem:[%s166 + $0x60] sm:$0xff]
      %v187 = vld [vmem:[%s166 + $0x68] sm:$0xff]
      %v188 = vld [vmem:[%s166 + $0x70] sm:$0xff]
      %v189 = vld [vmem:[%s166 + $0x78] sm:$0xff]
      %v190 = vld [vmem:[%s166 + $0x80] sm:$0xff]
      %v191 = vld [vmem:[%s166 + $0x88] sm:$0xff]
      %v192 = vld [vmem:[%s166 + $0x90] sm:$0xff]
      %v193 = vld [vmem:[%s166 + $0x98] sm:$0xff]
      %v194 = vld [vmem:[%s166 + $0xa0] sm:$0xff]
      %v195 = vld [vmem:[%s166 + $0xa8] sm:$0xff]
      %v196 = vld [vmem:[%s166 + $0xb0] sm:$0xff]
      %v197 = vld [vmem:[%s166 + $0xb8] sm:$0xff]
      %v198 = vld [vmem:[%s166 + $0xc0] sm:$0xff]
      %v199 = vld [vmem:[%s166 + $0xc8] sm:$0xff]
      %v200 = vld [vmem:[%s166 + $0xd0] sm:$0xff]
      %v201 = vld [vmem:[%s166 + $0xd8] sm:$0xff]
      %v202 = vld [vmem:[%s166 + $0xe0] sm:$0xff]
      %v203 = vld [vmem:[%s166 + $0xe8] sm:$0xff]
      %v204 = vld [vmem:[%s166 + $0xf0] sm:$0xff]
      %v205 = vld [vmem:[%s166 + $0xf8] sm:$0xff]
      %v206 = vld [vmem:[%s1] sm:$0xff]
      %v207 = vld [vmem:[%s1 + $0x8] sm:$0xff]
      %v208 = vld [vmem:[%s1 + $0x10] sm:$0xff]
      %v209 = vld [vmem:[%s1 + $0x18] sm:$0xff]
      %v210 = vld [vmem:[%s1 + $0x20] sm:$0xff]
      %v211 = vld [vmem:[%s1 + $0x28] sm:$0xff]
      %v212 = vld [vmem:[%s1 + $0x30] sm:$0xff]
      %v213 = vld [vmem:[%s1 + $0x38] sm:$0xff]
      %v214 = vld [vmem:[%s1 + $0x40] sm:$0xff]
      %v215 = vld [vmem:[%s1 + $0x48] sm:$0xff]
      %v216 = vld [vmem:[%s1 + $0x50] sm:$0xff]
      %v217 = vld [vmem:[%s1 + $0x58] sm:$0xff]
      %v218 = vld [vmem:[%s1 + $0x60] sm:$0xff]
      %v219 = vld [vmem:[%s1 + $0x68] sm:$0xff]
      %v220 = vld [vmem:[%s1 + $0x70] sm:$0xff]
      %v221 = vld [vmem:[%s1 + $0x78] sm:$0xff]
      %v222 = vld [vmem:[%s1 + $0x80] sm:$0xff]
      %v223 = vld [vmem:[%s1 + $0x88] sm:$0xff]
      %v224 = vld [vmem:[%s1 + $0x90] sm:$0xff]
      %v225 = vld [vmem:[%s1 + $0x98] sm:$0xff]
      %v226 = vld [vmem:[%s1 + $0xa0] sm:$0xff]
      %v227 = vld [vmem:[%s1 + $0xa8] sm:$0xff]
      %v228 = vld [vmem:[%s1 + $0xb0] sm:$0xff]
      %v229 = vld [vmem:[%s1 + $0xb8] sm:$0xff]
      %v230 = vld [vmem:[%s1 + $0xc0] sm:$0xff]
      %v231 = vld [vmem:[%s1 + $0xc8] sm:$0xff]
      %v232 = vld [vmem:[%s1 + $0xd0] sm:$0xff]
      %v233 = vld [vmem:[%s1 + $0xd8] sm:$0xff]
      %v234 = vld [vmem:[%s1 + $0xe0] sm:$0xff]
      %v235 = vld [vmem:[%s1 + $0xe8] sm:$0xff]
      %v236 = vld [vmem:[%s1 + $0xf0] sm:$0xff]
      %v237 = vld [vmem:[%s1 + $0xf8] sm:$0xff]
      %v238 = vld [vmem:[%s1 + $0x100] sm:$0xff]
      %v239 = vld [vmem:[%s1 + $0x108] sm:$0xff]
      %v240 = vld [vmem:[%s1 + $0x110] sm:$0xff]
      %v241 = vld [vmem:[%s1 + $0x118] sm:$0xff]
      %v242 = vld [vmem:[%s1 + $0x120] sm:$0xff]
      %v243 = vld [vmem:[%s1 + $0x128] sm:$0xff]
      %v244 = vld [vmem:[%s1 + $0x130] sm:$0xff]
      %v245 = vld [vmem:[%s1 + $0x138] sm:$0xff]
      %v246 = vld [vmem:[%s1 + $0x140] sm:$0xff]
      %v247 = vld [vmem:[%s1 + $0x148] sm:$0xff]
      %v248 = vld [vmem:[%s1 + $0x150] sm:$0xff]
      %v249 = vld [vmem:[%s1 + $0x158] sm:$0xff]
      %v250 = vld [vmem:[%s1 + $0x160] sm:$0xff]
      %v251 = vld [vmem:[%s1 + $0x168] sm:$0xff]
      %v252 = vld [vmem:[%s1 + $0x170] sm:$0xff]
      %v253 = vld [vmem:[%s1 + $0x178] sm:$0xff]
      %v254 = vld [vmem:[%s1 + $0x180] sm:$0xff]
      %v255 = vld [vmem:[%s1 + $0x188] sm:$0xff]
      %v256 = vld [vmem:[%s1 + $0x190] sm:$0xff]
      %v257 = vld [vmem:[%s1 + $0x198] sm:$0xff]
      %v258 = vld [vmem:[%s1 + $0x1a0] sm:$0xff]
      %v259 = vld [vmem:[%s1 + $0x1a8] sm:$0xff]
      %v260 = vld [vmem:[%s1 + $0x1b0] sm:$0xff]
      %v261 = vld [vmem:[%s1 + $0x1b8] sm:$0xff]
      %v262 = vld [vmem:[%s1 + $0x1c0] sm:$0xff]
      %v263 = vld [vmem:[%s1 + $0x1c8] sm:$0xff]
      %v264 = vld [vmem:[%s1 + $0x1d0] sm:$0xff]
      %v265 = vld [vmem:[%s1 + $0x1d8] sm:$0xff]
      %v266 = vld [vmem:[%s1 + $0x1e0] sm:$0xff]
      %v267 = vld [vmem:[%s1 + $0x1e8] sm:$0xff]
      %v268 = vld [vmem:[%s1 + $0x1f0] sm:$0xff]
      %v269 = vld [vmem:[%s1 + $0x1f8] sm:$0xff]
      %v270 = vld [vmem:[%s1 + $0x200] sm:$0xff]
      %v271 = vld [vmem:[%s1 + $0x208] sm:$0xff]
      %v272 = vld [vmem:[%s1 + $0x210] sm:$0xff]
      %v273 = vld [vmem:[%s1 + $0x218] sm:$0xff]
      %v274 = vld [vmem:[%s1 + $0x220] sm:$0xff]
      %v275 = vld [vmem:[%s1 + $0x228] sm:$0xff]
      %v276 = vld [vmem:[%s1 + $0x230] sm:$0xff]
      %v277 = vld [vmem:[%s1 + $0x238] sm:$0xff]
      %v278 = vld [vmem:[%s1 + $0x240] sm:$0xff]
      %v279 = vld [vmem:[%s1 + $0x248] sm:$0xff]
      %v280 = vld [vmem:[%s1 + $0x250] sm:$0xff]
      %v281 = vld [vmem:[%s1 + $0x258] sm:$0xff]
      %v282 = vld [vmem:[%s1 + $0x260] sm:$0xff]
      %v283 = vld [vmem:[%s1 + $0x268] sm:$0xff]
      %v284 = vld [vmem:[%s1 + $0x270] sm:$0xff]
      %v285 = vld [vmem:[%s1 + $0x278] sm:$0xff]
      %286 = vmatprep.subr.mxu0 %v207
      %287 = vmatpush1.msra.mxu0 %v206
      %288 = vmatprep.subr.mxu0 %v212
      %289 = vmatpush1.msra.mxu0 %v211
      %290 = vmatprep.subr.mxu0 %v217
      %291 = vmatpush1.msra.mxu0 %v216
      %292 = vmatprep.subr.mxu0 %v222
      %293 = vmatpush1.msra.mxu0 %v221
      %294 = vmatprep.subr.mxu0 %v227
      %295 = vmatpush1.msra.mxu0 %v226
      %296 = vmatprep.subr.mxu0 %v232
      %297 = vmatpush1.msra.mxu0 %v231
      %298 = vmatprep.subr.mxu0 %v237
      %299 = vmatpush1.msra.mxu0 %v236
      %300 = vmatprep.subr.mxu0 %v242
      %301 = vmatpush1.msra.mxu0 %v241
      %302 = vmatprep.subr.mxu0 %v247
      %303 = vmatpush1.msra.mxu0 %v246
      %304 = vmatprep.subr.mxu0 %v252
      %305 = vmatpush1.msra.mxu0 %v251
      %306 = vmatprep.subr.mxu0 %v257
      %307 = vmatpush1.msra.mxu0 %v256
      %308 = vmatprep.subr.mxu0 %v262
      %309 = vmatpush1.msra.mxu0 %v261
      %310 = vmatprep.subr.mxu0 %v267
      %311 = vmatpush1.msra.mxu0 %v266
      %312 = vmatprep.subr.mxu0 %v272
      %313 = vmatpush1.msra.mxu0 %v271
      %314 = vmatprep.subr.mxu0 %v277
      %315 = vmatpush1.msra.mxu0 %v276
      %316 = vmatprep.subr.mxu0 %v282
      %317 = vmatpush1.msra.mxu0 %v281
      %318 = vmatprep.subr.mxu0 0.0
      %319 = vmatpush1.msra.mxu0 0.0
      %320 = vmatprep.subr.mxu0 0.0
      %321 = vmatpush1.msra.mxu0 0.0
      %322 = vmatprep.subr.mxu0 0.0
      %323 = vmatpush1.msra.mxu0 0.0
      %324 = vmatprep.subr.mxu0 0.0
      %325 = vmatpush1.msra.mxu0 0.0
      %326 = vmatprep.subr.mxu0 0.0
      %327 = vmatpush1.msra.mxu0 0.0
      %328 = vmatprep.subr.mxu0 0.0
      %329 = vmatpush1.msra.mxu0 0.0
      %330 = vmatprep.subr.mxu0 0.0
      %331 = vmatpush1.msra.mxu0 0.0
      %332 = vmatprep.subr.mxu0 0.0
      %333 = vmatpush1.msra.mxu0 0.0
      %334 = vmatprep.subr.mxu0 0.0
      %335 = vmatpush1.msra.mxu0 0.0
      %336 = vmatprep.subr.mxu0 0.0
      %337 = vmatpush1.msra.mxu0 0.0
      %338 = vmatprep.subr.mxu0 0.0
      %339 = vmatpush1.msra.mxu0 0.0
      %340 = vmatprep.subr.mxu0 0.0
      %341 = vmatpush1.msra.mxu0 0.0
      %342 = vmatprep.subr.mxu0 0.0
      %343 = vmatpush1.msra.mxu0 0.0
      %344 = vmatprep.subr.mxu0 0.0
      %345 = vmatpush1.msra.mxu0 0.0
      %346 = vmatprep.subr.mxu0 0.0
      %347 = vmatpush1.msra.mxu0 0.0
      %348 = vmatprep.subr.mxu0 0.0
      %349 = vmatpush1.msra.mxu0 0.0
      %350 = vmatprep.mubr.f32.mxu0 0.0
      %351 = vmatmul.mubr.f32.gmra.mrb[0].mxu0 %v174
      %v352 = vpop.f32.mrb[0].mxu0
      %v353 = vadd.f32 0.0, %v352
      %v354 = vpop.f32.mrb[0].mxu0
      %v355 = vadd.f32 0.0, %v354
      %356 = vmatprep.mubr.f32.mxu0 0.0
      %357 = vmatmul.mubr.f32.gmra.mrb[0].mxu0 %v175
      %v358 = vpop.f32.mrb[0].mxu0
      %v359 = vadd.f32 0.0, %v358
      %v360 = vpop.f32.mrb[0].mxu0
      %v361 = vadd.f32 0.0, %v360
      %362 = vmatprep.mubr.f32.mxu0 0.0
      %363 = vmatmul.mubr.f32.gmra.mrb[0].mxu0 %v176
      %v364 = vpop.f32.mrb[0].mxu0
      %v365 = vadd.f32 0.0, %v364
      %v366 = vpop.f32.mrb[0].mxu0
      %v367 = vadd.f32 0.0, %v366
      %368 = vmatprep.mubr.f32.mxu0 0.0
      %369 = vmatmul.mubr.f32.gmra.mrb[0].mxu0 %v177
      %v370 = vpop.f32.mrb[0].mxu0
      %v371 = vadd.f32 0.0, %v370
      %v372 = vpop.f32.mrb[0].mxu0
      %v373 = vadd.f32 0.0, %v372
      %374 = vmatprep.mubr.f32.mxu0 0.0
      %375 = vmatmul.mubr.f32.gmra.mrb[0].mxu0 %v178
      %v376 = vpop.f32.mrb[0].mxu0
      %v377 = vadd.f32 0.0, %v376
      %v378 = vpop.f32.mrb[0].mxu0
      %v379 = vadd.f32 0.0, %v378
      %380 = vmatprep.mubr.f32.mxu0 0.0
      %381 = vmatmul.mubr.f32.gmra.mrb[0].mxu0 %v179
      %v382 = vpop.f32.mrb[0].mxu0
      %v383 = vadd.f32 0.0, %v382
      %v384 = vpop.f32.mrb[0].mxu0
      %v385 = vadd.f32 0.0, %v384
      %386 = vmatprep.mubr.f32.mxu0 0.0
      %387 = vmatmul.mubr.f32.gmra.mrb[0].mxu0 %v180
      %v388 = vpop.f32.mrb[0].mxu0
      %v389 = vadd.f32 0.0, %v388
      %v390 = vpop.f32.mrb[0].mxu0
      %v391 = vadd.f32 0.0, %v390
      %392 = vmatprep.mubr.f32.mxu0 0.0
      %393 = vmatmul.mubr.f32.gmra.mrb[0].mxu0 %v181
      %v394 = vpop.f32.mrb[0].mxu0
      %v395 = vadd.f32 0.0, %v394
      %v396 = vpop.f32.mrb[0].mxu0
      %v397 = vadd.f32 0.0, %v396
      %398 = vmatprep.mubr.f32.mxu0 0.0
      %399 = vmatmul.mubr.f32.gmra.mrb[0].mxu0 %v182
      %v400 = vpop.f32.mrb[0].mxu0
      %v401 = vadd.f32 0.0, %v400
      %v402 = vpop.f32.mrb[0].mxu0
      %v403 = vadd.f32 0.0, %v402
      %404 = vmatprep.mubr.f32.mxu0 0.0
      %405 = vmatmul.mubr.f32.gmra.mrb[0].mxu0 %v183
      %v406 = vpop.f32.mrb[0].mxu0
      %v407 = vadd.f32 0.0, %v406
      %v408 = vpop.f32.mrb[0].mxu0
      %v409 = vadd.f32 0.0, %v408
      %410 = vmatprep.mubr.f32.mxu0 0.0
      %411 = vmatmul.mubr.f32.gmra.mrb[0].mxu0 %v184
      %v412 = vpop.f32.mrb[0].mxu0
      %v413 = vadd.f32 0.0, %v412
      %v414 = vpop.f32.mrb[0].mxu0
      %v415 = vadd.f32 0.0, %v414
      %416 = vmatprep.mubr.f32.mxu0 0.0
      %417 = vmatmul.mubr.f32.gmra.mrb[0].mxu0 %v185
      %v418 = vpop.f32.mrb[0].mxu0
      %v419 = vadd.f32 0.0, %v418
      %v420 = vpop.f32.mrb[0].mxu0
      %v421 = vadd.f32 0.0, %v420
      %422 = vmatprep.mubr.f32.mxu0 0.0
      %423 = vmatmul.mubr.f32.gmra.mrb[0].mxu0 %v186
      %v424 = vpop.f32.mrb[0].mxu0
      %v425 = vadd.f32 0.0, %v424
      %v426 = vpop.f32.mrb[0].mxu0
      %v427 = vadd.f32 0.0, %v426
      %428 = vmatprep.mubr.f32.mxu0 0.0
      %429 = vmatmul.mubr.f32.gmra.mrb[0].mxu0 %v187
      %v430 = vpop.f32.mrb[0].mxu0
      %v431 = vadd.f32 0.0, %v430
      %v432 = vpop.f32.mrb[0].mxu0
      %v433 = vadd.f32 0.0, %v432
      %434 = vmatprep.mubr.f32.mxu0 0.0
      %435 = vmatmul.mubr.f32.gmra.mrb[0].mxu0 %v188
      %v436 = vpop.f32.mrb[0].mxu0
      %v437 = vadd.f32 0.0, %v436
      %v438 = vpop.f32.mrb[0].mxu0
      %v439 = vadd.f32 0.0, %v438
      %440 = vmatprep.mubr.f32.mxu0 0.0
      %441 = vmatmul.mubr.f32.gmra.mrb[0].mxu0 %v189
      %v442 = vpop.f32.mrb[0].mxu0
      %v443 = vadd.f32 0.0, %v442
      %v444 = vpop.f32.mrb[0].mxu0
      %v445 = vadd.f32 0.0, %v444
      %446 = vmatprep.mubr.f32.mxu0 0.0
      %447 = vmatmul.mubr.f32.gmra.mrb[0].mxu0 %v190
      %v448 = vpop.f32.mrb[0].mxu0
      %v449 = vadd.f32 0.0, %v448
      %v450 = vpop.f32.mrb[0].mxu0
      %v451 = vadd.f32 0.0, %v450
      %452 = vmatprep.mubr.f32.mxu0 0.0
      %453 = vmatmul.mubr.f32.gmra.mrb[0].mxu0 %v191
      %v454 = vpop.f32.mrb[0].mxu0
      %v455 = vadd.f32 0.0, %v454
      %v456 = vpop.f32.mrb[0].mxu0
      %v457 = vadd.f32 0.0, %v456
      %458 = vmatprep.mubr.f32.mxu0 0.0
      %459 = vmatmul.mubr.f32.gmra.mrb[0].mxu0 %v192
      %v460 = vpop.f32.mrb[0].mxu0
      %v461 = vadd.f32 0.0, %v460
      %v462 = vpop.f32.mrb[0].mxu0
      %v463 = vadd.f32 0.0, %v462
      %464 = vmatprep.mubr.f32.mxu0 0.0
      %465 = vmatmul.mubr.f32.gmra.mrb[0].mxu0 %v193
      %v466 = vpop.f32.mrb[0].mxu0
      %v467 = vadd.f32 0.0, %v466
      %v468 = vpop.f32.mrb[0].mxu0
      %v469 = vadd.f32 0.0, %v468
      %470 = vmatprep.mubr.f32.mxu0 0.0
      %471 = vmatmul.mubr.f32.gmra.mrb[0].mxu0 %v194
      %v472 = vpop.f32.mrb[0].mxu0
      %v473 = vadd.f32 0.0, %v472
      %v474 = vpop.f32.mrb[0].mxu0
      %v475 = vadd.f32 0.0, %v474
      %476 = vmatprep.mubr.f32.mxu0 0.0
      %477 = vmatmul.mubr.f32.gmra.mrb[0].mxu0 %v195
      %v478 = vpop.f32.mrb[0].mxu0
      %v479 = vadd.f32 0.0, %v478
      %v480 = vpop.f32.mrb[0].mxu0
      %v481 = vadd.f32 0.0, %v480
      %482 = vmatprep.mubr.f32.mxu0 0.0
      %483 = vmatmul.mubr.f32.gmra.mrb[0].mxu0 %v196
      %v484 = vpop.f32.mrb[0].mxu0
      %v485 = vadd.f32 0.0, %v484
      %v486 = vpop.f32.mrb[0].mxu0
      %v487 = vadd.f32 0.0, %v486
      %488 = vmatprep.mubr.f32.mxu0 0.0
      %489 = vmatmul.mubr.f32.gmra.mrb[0].mxu0 %v197
      %v490 = vpop.f32.mrb[0].mxu0
      %v491 = vadd.f32 0.0, %v490
      %v492 = vpop.f32.mrb[0].mxu0
      %v493 = vadd.f32 0.0, %v492
      %494 = vmatprep.mubr.f32.mxu0 0.0
      %495 = vmatmul.mubr.f32.gmra.mrb[0].mxu0 %v198
      %v496 = vpop.f32.mrb[0].mxu0
      %v497 = vadd.f32 0.0, %v496
      %v498 = vpop.f32.mrb[0].mxu0
      %v499 = vadd.f32 0.0, %v498
      %500 = vmatprep.mubr.f32.mxu0 0.0
      %501 = vmatmul.mubr.f32.gmra.mrb[0].mxu0 %v199
      %v502 = vpop.f32.mrb[0].mxu0
      %v503 = vadd.f32 0.0, %v502
      %v504 = vpop.f32.mrb[0].mxu0
      %v505 = vadd.f32 0.0, %v504
      %506 = vmatprep.mubr.f32.mxu0 0.0
      %507 = vmatmul.mubr.f32.gmra.mrb[0].mxu0 %v200
      %v508 = vpop.f32.mrb[0].mxu0
      %v509 = vadd.f32 0.0, %v508
      %v510 = vpop.f32.mrb[0].mxu0
      %v511 = vadd.f32 0.0, %v510
      %512 = vmatprep.mubr.f32.mxu0 0.0
      %513 = vmatmul.mubr.f32.gmra.mrb[0].mxu0 %v201
      %v514 = vpop.f32.mrb[0].mxu0
      %v515 = vadd.f32 0.0, %v514
      %v516 = vpop.f32.mrb[0].mxu0
      %v517 = vadd.f32 0.0, %v516
      %518 = vmatprep.mubr.f32.mxu0 0.0
      %519 = vmatmul.mubr.f32.gmra.mrb[0].mxu0 %v202
      %v520 = vpop.f32.mrb[0].mxu0
      %v521 = vadd.f32 0.0, %v520
      %v522 = vpop.f32.mrb[0].mxu0
      %v523 = vadd.f32 0.0, %v522
      %524 = vmatprep.mubr.f32.mxu0 0.0
      %525 = vmatmul.mubr.f32.gmra.mrb[0].mxu0 %v203
      %v526 = vpop.f32.mrb[0].mxu0
      %v527 = vadd.f32 0.0, %v526
      %v528 = vpop.f32.mrb[0].mxu0
      %v529 = vadd.f32 0.0, %v528
      %530 = vmatprep.mubr.f32.mxu0 0.0
      %531 = vmatmul.mubr.f32.gmra.mrb[0].mxu0 %v204
      %v532 = vpop.f32.mrb[0].mxu0
      %v533 = vadd.f32 0.0, %v532
      %v534 = vpop.f32.mrb[0].mxu0
      %v535 = vadd.f32 0.0, %v534
      %536 = vmatprep.mubr.f32.mxu0 0.0
      %537 = vmatmul.mubr.f32.gmra.mrb[0].mxu0 %v205
      %v538 = vpop.f32.mrb[0].mxu0
      %v539 = vadd.f32 0.0, %v538
      %v540 = vpop.f32.mrb[0].mxu0
      %v541 = vadd.f32 0.0, %v540
      %542 = vdwg.mxu0
      %543 = vmatprep.subr.mxu0 %v209
      %544 = vmatpush1.msra.mxu0 %v208
      %545 = vmatprep.subr.mxu0 %v214
      %546 = vmatpush1.msra.mxu0 %v213
      %547 = vmatprep.subr.mxu0 %v219
      %548 = vmatpush1.msra.mxu0 %v218
      %549 = vmatprep.subr.mxu0 %v224
      %550 = vmatpush1.msra.mxu0 %v223
      %551 = vmatprep.subr.mxu0 %v229
      %552 = vmatpush1.msra.mxu0 %v228
      %553 = vmatprep.subr.mxu0 %v234
      %554 = vmatpush1.msra.mxu0 %v233
      %555 = vmatprep.subr.mxu0 %v239
      %556 = vmatpush1.msra.mxu0 %v238
      %557 = vmatprep.subr.mxu0 %v244
      %558 = vmatpush1.msra.mxu0 %v243
      %559 = vmatprep.subr.mxu0 %v249
      %560 = vmatpush1.msra.mxu0 %v248
      %561 = vmatprep.subr.mxu0 %v254
      %562 = vmatpush1.msra.mxu0 %v253
      %563 = vmatprep.subr.mxu0 %v259
      %564 = vmatpush1.msra.mxu0 %v258
      %565 = vmatprep.subr.mxu0 %v264
      %566 = vmatpush1.msra.mxu0 %v263
      %567 = vmatprep.subr.mxu0 %v269
      %568 = vmatpush1.msra.mxu0 %v268
      %569 = vmatprep.subr.mxu0 %v274
      %570 = vmatpush1.msra.mxu0 %v273
      %571 = vmatprep.subr.mxu0 %v279
      %572 = vmatpush1.msra.mxu0 %v278
      %573 = vmatprep.subr.mxu0 %v284
      %574 = vmatpush1.msra.mxu0 %v283
      %575 = vmatprep.subr.mxu0 0.0
      %576 = vmatpush1.msra.mxu0 0.0
      %577 = vmatprep.subr.mxu0 0.0
      %578 = vmatpush1.msra.mxu0 0.0
      %579 = vmatprep.subr.mxu0 0.0
      %580 = vmatpush1.msra.mxu0 0.0
      %581 = vmatprep.subr.mxu0 0.0
      %582 = vmatpush1.msra.mxu0 0.0
      %583 = vmatprep.subr.mxu0 0.0
      %584 = vmatpush1.msra.mxu0 0.0
      %585 = vmatprep.subr.mxu0 0.0
      %586 = vmatpush1.msra.mxu0 0.0
      %587 = vmatprep.subr.mxu0 0.0
      %588 = vmatpush1.msra.mxu0 0.0
      %589 = vmatprep.subr.mxu0 0.0
      %590 = vmatpush1.msra.mxu0 0.0
      %591 = vmatprep.subr.mxu0 0.0
      %592 = vmatpush1.msra.mxu0 0.0
      %593 = vmatprep.subr.mxu0 0.0
      %594 = vmatpush1.msra.mxu0 0.0
      %595 = vmatprep.subr.mxu0 0.0
      %596 = vmatpush1.msra.mxu0 0.0
      %597 = vmatprep.subr.mxu0 0.0
      %598 = vmatpush1.msra.mxu0 0.0
      %599 = vmatprep.subr.mxu0 0.0
      %600 = vmatpush1.msra.mxu0 0.0
      %601 = vmatprep.subr.mxu0 0.0
      %602 = vmatpush1.msra.mxu0 0.0
      %603 = vmatprep.subr.mxu0 0.0
      %604 = vmatpush1.msra.mxu0 0.0
      %605 = vmatprep.subr.mxu0 0.0
      %606 = vmatpush1.msra.mxu0 0.0
      %607 = vmatprep.mubr.f32.mxu0 0.0
      %608 = vmatmul.mubr.f32.gmra.mrb[0].mxu0 %v174
      %v609 = vpop.f32.mrb[0].mxu0
      %v610 = vadd.f32 0.0, %v609
      %v611 = vpop.f32.mrb[0].mxu0
      %v612 = vadd.f32 0.0, %v611
      %613 = vmatprep.mubr.f32.mxu0 0.0
      %614 = vmatmul.mubr.f32.gmra.mrb[0].mxu0 %v175
      %v615 = vpop.f32.mrb[0].mxu0
      %v616 = vadd.f32 0.0, %v615
      %v617 = vpop.f32.mrb[0].mxu0
      %v618 = vadd.f32 0.0, %v617
      %619 = vmatprep.mubr.f32.mxu0 0.0
      %620 = vmatmul.mubr.f32.gmra.mrb[0].mxu0 %v176
      %v621 = vpop.f32.mrb[0].mxu0
      %v622 = vadd.f32 0.0, %v621
      %v623 = vpop.f32.mrb[0].mxu0
      %v624 = vadd.f32 0.0, %v623
      %625 = vmatprep.mubr.f32.mxu0 0.0
      %626 = vmatmul.mubr.f32.gmra.mrb[0].mxu0 %v177
      %v627 = vpop.f32.mrb[0].mxu0
      %v628 = vadd.f32 0.0, %v627
      %v629 = vpop.f32.mrb[0].mxu0
      %v630 = vadd.f32 0.0, %v629
      %631 = vmatprep.mubr.f32.mxu0 0.0
      %632 = vmatmul.mubr.f32.gmra.mrb[0].mxu0 %v178
      %v633 = vpop.f32.mrb[0].mxu0
      %v634 = vadd.f32 0.0, %v633
      %v635 = vpop.f32.mrb[0].mxu0
      %v636 = vadd.f32 0.0, %v635
      %637 = vmatprep.mubr.f32.mxu0 0.0
      %638 = vmatmul.mubr.f32.gmra.mrb[0].mxu0 %v179
      %v639 = vpop.f32.mrb[0].mxu0
      %v640 = vadd.f32 0.0, %v639
      %v641 = vpop.f32.mrb[0].mxu0
      %v642 = vadd.f32 0.0, %v641
      %643 = vmatprep.mubr.f32.mxu0 0.0
      %644 = vmatmul.mubr.f32.gmra.mrb[0].mxu0 %v180
      %v645 = vpop.f32.mrb[0].mxu0
      %v646 = vadd.f32 0.0, %v645
      %v647 = vpop.f32.mrb[0].mxu0
      %v648 = vadd.f32 0.0, %v647
      %649 = vmatprep.mubr.f32.mxu0 0.0
      %650 = vmatmul.mubr.f32.gmra.mrb[0].mxu0 %v181
      %v651 = vpop.f32.mrb[0].mxu0
      %v652 = vadd.f32 0.0, %v651
      %v653 = vpop.f32.mrb[0].mxu0
      %v654 = vadd.f32 0.0, %v653
      %655 = vmatprep.mubr.f32.mxu0 0.0
      %656 = vmatmul.mubr.f32.gmra.mrb[0].mxu0 %v182
      %v657 = vpop.f32.mrb[0].mxu0
      %v658 = vadd.f32 0.0, %v657
      %v659 = vpop.f32.mrb[0].mxu0
      %v660 = vadd.f32 0.0, %v659
      %661 = vmatprep.mubr.f32.mxu0 0.0
      %662 = vmatmul.mubr.f32.gmra.mrb[0].mxu0 %v183
      %v663 = vpop.f32.mrb[0].mxu0
      %v664 = vadd.f32 0.0, %v663
      %v665 = vpop.f32.mrb[0].mxu0
      %v666 = vadd.f32 0.0, %v665
      %667 = vmatprep.mubr.f32.mxu0 0.0
      %668 = vmatmul.mubr.f32.gmra.mrb[0].mxu0 %v184
      %v669 = vpop.f32.mrb[0].mxu0
      %v670 = vadd.f32 0.0, %v669
      %v671 = vpop.f32.mrb[0].mxu0
      %v672 = vadd.f32 0.0, %v671
      %673 = vmatprep.mubr.f32.mxu0 0.0
      %674 = vmatmul.mubr.f32.gmra.mrb[0].mxu0 %v185
      %v675 = vpop.f32.mrb[0].mxu0
      %v676 = vadd.f32 0.0, %v675
      %v677 = vpop.f32.mrb[0].mxu0
      %v678 = vadd.f32 0.0, %v677
      %679 = vmatprep.mubr.f32.mxu0 0.0
      %680 = vmatmul.mubr.f32.gmra.mrb[0].mxu0 %v186
      %v681 = vpop.f32.mrb[0].mxu0
      %v682 = vadd.f32 0.0, %v681
      %v683 = vpop.f32.mrb[0].mxu0
      %v684 = vadd.f32 0.0, %v683
      %685 = vmatprep.mubr.f32.mxu0 0.0
      %686 = vmatmul.mubr.f32.gmra.mrb[0].mxu0 %v187
      %v687 = vpop.f32.mrb[0].mxu0
      %v688 = vadd.f32 0.0, %v687
      %v689 = vpop.f32.mrb[0].mxu0
      %v690 = vadd.f32 0.0, %v689
      %691 = vmatprep.mubr.f32.mxu0 0.0
      %692 = vmatmul.mubr.f32.gmra.mrb[0].mxu0 %v188
      %v693 = vpop.f32.mrb[0].mxu0
      %v694 = vadd.f32 0.0, %v693
      %v695 = vpop.f32.mrb[0].mxu0
      %v696 = vadd.f32 0.0, %v695
      %697 = vmatprep.mubr.f32.mxu0 0.0
      %698 = vmatmul.mubr.f32.gmra.mrb[0].mxu0 %v189
      %v699 = vpop.f32.mrb[0].mxu0
      %v700 = vadd.f32 0.0, %v699
      %v701 = vpop.f32.mrb[0].mxu0
      %v702 = vadd.f32 0.0, %v701
      %703 = vmatprep.mubr.f32.mxu0 0.0
      %704 = vmatmul.mubr.f32.gmra.mrb[0].mxu0 %v190
      %v705 = vpop.f32.mrb[0].mxu0
      %v706 = vadd.f32 0.0, %v705
      %v707 = vpop.f32.mrb[0].mxu0
      %v708 = vadd.f32 0.0, %v707
      %709 = vmatprep.mubr.f32.mxu0 0.0
      %710 = vmatmul.mubr.f32.gmra.mrb[0].mxu0 %v191
      %v711 = vpop.f32.mrb[0].mxu0
      %v712 = vadd.f32 0.0, %v711
      %v713 = vpop.f32.mrb[0].mxu0
      %v714 = vadd.f32 0.0, %v713
      %715 = vmatprep.mubr.f32.mxu0 0.0
      %716 = vmatmul.mubr.f32.gmra.mrb[0].mxu0 %v192
      %v717 = vpop.f32.mrb[0].mxu0
      %v718 = vadd.f32 0.0, %v717
      %v719 = vpop.f32.mrb[0].mxu0
      %v720 = vadd.f32 0.0, %v719
      %721 = vmatprep.mubr.f32.mxu0 0.0
      %722 = vmatmul.mubr.f32.gmra.mrb[0].mxu0 %v193
      %v723 = vpop.f32.mrb[0].mxu0
      %v724 = vadd.f32 0.0, %v723
      %v725 = vpop.f32.mrb[0].mxu0
      %v726 = vadd.f32 0.0, %v725
      %727 = vmatprep.mubr.f32.mxu0 0.0
      %728 = vmatmul.mubr.f32.gmra.mrb[0].mxu0 %v194
      %v729 = vpop.f32.mrb[0].mxu0
      %v730 = vadd.f32 0.0, %v729
      %v731 = vpop.f32.mrb[0].mxu0
      %v732 = vadd.f32 0.0, %v731
      %733 = vmatprep.mubr.f32.mxu0 0.0
      %734 = vmatmul.mubr.f32.gmra.mrb[0].mxu0 %v195
      %v735 = vpop.f32.mrb[0].mxu0
      %v736 = vadd.f32 0.0, %v735
      %v737 = vpop.f32.mrb[0].mxu0
      %v738 = vadd.f32 0.0, %v737
      %739 = vmatprep.mubr.f32.mxu0 0.0
      %740 = vmatmul.mubr.f32.gmra.mrb[0].mxu0 %v196
      %v741 = vpop.f32.mrb[0].mxu0
      %v742 = vadd.f32 0.0, %v741
      %v743 = vpop.f32.mrb[0].mxu0
      %v744 = vadd.f32 0.0, %v743
      %745 = vmatprep.mubr.f32.mxu0 0.0
      %746 = vmatmul.mubr.f32.gmra.mrb[0].mxu0 %v197
      %v747 = vpop.f32.mrb[0].mxu0
      %v748 = vadd.f32 0.0, %v747
      %v749 = vpop.f32.mrb[0].mxu0
      %v750 = vadd.f32 0.0, %v749
      %751 = vmatprep.mubr.f32.mxu0 0.0
      %752 = vmatmul.mubr.f32.gmra.mrb[0].mxu0 %v198
      %v753 = vpop.f32.mrb[0].mxu0
      %v754 = vadd.f32 0.0, %v753
      %v755 = vpop.f32.mrb[0].mxu0
      %v756 = vadd.f32 0.0, %v755
      %757 = vmatprep.mubr.f32.mxu0 0.0
      %758 = vmatmul.mubr.f32.gmra.mrb[0].mxu0 %v199
      %v759 = vpop.f32.mrb[0].mxu0
      %v760 = vadd.f32 0.0, %v759
      %v761 = vpop.f32.mrb[0].mxu0
      %v762 = vadd.f32 0.0, %v761
      %763 = vmatprep.mubr.f32.mxu0 0.0
      %764 = vmatmul.mubr.f32.gmra.mrb[0].mxu0 %v200
      %v765 = vpop.f32.mrb[0].mxu0
      %v766 = vadd.f32 0.0, %v765
      %v767 = vpop.f32.mrb[0].mxu0
      %v768 = vadd.f32 0.0, %v767
      %769 = vmatprep.mubr.f32.mxu0 0.0
      %770 = vmatmul.mubr.f32.gmra.mrb[0].mxu0 %v201
      %v771 = vpop.f32.mrb[0].mxu0
      %v772 = vadd.f32 0.0, %v771
      %v773 = vpop.f32.mrb[0].mxu0
      %v774 = vadd.f32 0.0, %v773
      %775 = vmatprep.mubr.f32.mxu0 0.0
      %776 = vmatmul.mubr.f32.gmra.mrb[0].mxu0 %v202
      %v777 = vpop.f32.mrb[0].mxu0
      %v778 = vadd.f32 0.0, %v777
      %v779 = vpop.f32.mrb[0].mxu0
      %v780 = vadd.f32 0.0, %v779
      %781 = vmatprep.mubr.f32.mxu0 0.0
      %782 = vmatmul.mubr.f32.gmra.mrb[0].mxu0 %v203
      %v783 = vpop.f32.mrb[0].mxu0
      %v784 = vadd.f32 0.0, %v783
      %v785 = vpop.f32.mrb[0].mxu0
      %v786 = vadd.f32 0.0, %v785
      %787 = vmatprep.mubr.f32.mxu0 0.0
      %788 = vmatmul.mubr.f32.gmra.mrb[0].mxu0 %v204
      %v789 = vpop.f32.mrb[0].mxu0
      %v790 = vadd.f32 0.0, %v789
      %v791 = vpop.f32.mrb[0].mxu0
      %v792 = vadd.f32 0.0, %v791
      %793 = vmatprep.mubr.f32.mxu0 0.0
      %794 = vmatmul.mubr.f32.gmra.mrb[0].mxu0 %v205
      %v795 = vpop.f32.mrb[0].mxu0
      %v796 = vadd.f32 0.0, %v795
      %v797 = vpop.f32.mrb[0].mxu0
      %v798 = vadd.f32 0.0, %v797
      %799 = vdwg.mxu0
      %800 = vmatprep.subr.mxu0 0.0
      %801 = vmatpush1.msra.mxu0 %v210
      %802 = vmatprep.subr.mxu0 0.0
      %803 = vmatpush1.msra.mxu0 %v215
      %804 = vmatprep.subr.mxu0 0.0
      %805 = vmatpush1.msra.mxu0 %v220
      %806 = vmatprep.subr.mxu0 0.0
      %807 = vmatpush1.msra.mxu0 %v225
      %808 = vmatprep.subr.mxu0 0.0
      %809 = vmatpush1.msra.mxu0 %v230
      %810 = vmatprep.subr.mxu0 0.0
      %811 = vmatpush1.msra.mxu0 %v235
      %812 = vmatprep.subr.mxu0 0.0
      %813 = vmatpush1.msra.mxu0 %v240
      %814 = vmatprep.subr.mxu0 0.0
      %815 = vmatpush1.msra.mxu0 %v245
      %816 = vmatprep.subr.mxu0 0.0
      %817 = vmatpush1.msra.mxu0 %v250
      %818 = vmatprep.subr.mxu0 0.0
      %819 = vmatpush1.msra.mxu0 %v255
      %820 = vmatprep.subr.mxu0 0.0
      %821 = vmatpush1.msra.mxu0 %v260
      %822 = vmatprep.subr.mxu0 0.0
      %823 = vmatpush1.msra.mxu0 %v265
      %824 = vmatprep.subr.mxu0 0.0
      %825 = vmatpush1.msra.mxu0 %v270
      %826 = vmatprep.subr.mxu0 0.0
      %827 = vmatpush1.msra.mxu0 %v275
      %828 = vmatprep.subr.mxu0 0.0
      %829 = vmatpush1.msra.mxu0 %v280
      %830 = vmatprep.subr.mxu0 0.0
      %831 = vmatpush1.msra.mxu0 %v285
      %832 = vmatprep.subr.mxu0 0.0
      %833 = vmatpush1.msra.mxu0 0.0
      %834 = vmatprep.subr.mxu0 0.0
      %835 = vmatpush1.msra.mxu0 0.0
      %836 = vmatprep.subr.mxu0 0.0
      %837 = vmatpush1.msra.mxu0 0.0
      %838 = vmatprep.subr.mxu0 0.0
      %839 = vmatpush1.msra.mxu0 0.0
      %840 = vmatprep.subr.mxu0 0.0
      %841 = vmatpush1.msra.mxu0 0.0
      %842 = vmatprep.subr.mxu0 0.0
      %843 = vmatpush1.msra.mxu0 0.0
      %844 = vmatprep.subr.mxu0 0.0
      %845 = vmatpush1.msra.mxu0 0.0
      %846 = vmatprep.subr.mxu0 0.0
      %847 = vmatpush1.msra.mxu0 0.0
      %848 = vmatprep.subr.mxu0 0.0
      %849 = vmatpush1.msra.mxu0 0.0
      %850 = vmatprep.subr.mxu0 0.0
      %851 = vmatpush1.msra.mxu0 0.0
      %852 = vmatprep.subr.mxu0 0.0
      %853 = vmatpush1.msra.mxu0 0.0
      %854 = vmatprep.subr.mxu0 0.0
      %855 = vmatpush1.msra.mxu0 0.0
      %856 = vmatprep.subr.mxu0 0.0
      %857 = vmatpush1.msra.mxu0 0.0
      %858 = vmatprep.subr.mxu0 0.0
      %859 = vmatpush1.msra.mxu0 0.0
      %860 = vmatprep.subr.mxu0 0.0
      %861 = vmatpush1.msra.mxu0 0.0
      %862 = vmatprep.subr.mxu0 0.0
      %863 = vmatpush1.msra.mxu0 0.0
      %864 = vmatprep.mubr.f32.mxu0 0.0
      %865 = vmatmul.mubr.f32.gmra.mrb[0].mxu0 %v174
      %v866 = vpop.f32.mrb[0].mxu0
      %v867 = vadd.f32 0.0, %v866
      %v868 = vpop.f32.mrb[0].mxu0
      %869 = vmatprep.mubr.f32.mxu0 0.0
      %870 = vmatmul.mubr.f32.gmra.mrb[0].mxu0 %v175
      %v871 = vpop.f32.mrb[0].mxu0
      %v872 = vadd.f32 0.0, %v871
      %v873 = vpop.f32.mrb[0].mxu0
      %874 = vmatprep.mubr.f32.mxu0 0.0
      %875 = vmatmul.mubr.f32.gmra.mrb[0].mxu0 %v176
      %v876 = vpop.f32.mrb[0].mxu0
      %v877 = vadd.f32 0.0, %v876
      %v878 = vpop.f32.mrb[0].mxu0
      %879 = vmatprep.mubr.f32.mxu0 0.0
      %880 = vmatmul.mubr.f32.gmra.mrb[0].mxu0 %v177
      %v881 = vpop.f32.mrb[0].mxu0
      %v882 = vadd.f32 0.0, %v881
      %v883 = vpop.f32.mrb[0].mxu0
      %884 = vmatprep.mubr.f32.mxu0 0.0
      %885 = vmatmul.mubr.f32.gmra.mrb[0].mxu0 %v178
      %v886 = vpop.f32.mrb[0].mxu0
      %v887 = vadd.f32 0.0, %v886
      %v888 = vpop.f32.mrb[0].mxu0
      %889 = vmatprep.mubr.f32.mxu0 0.0
      %890 = vmatmul.mubr.f32.gmra.mrb[0].mxu0 %v179
      %v891 = vpop.f32.mrb[0].mxu0
      %v892 = vadd.f32 0.0, %v891
      %v893 = vpop.f32.mrb[0].mxu0
      %894 = vmatprep.mubr.f32.mxu0 0.0
      %895 = vmatmul.mubr.f32.gmra.mrb[0].mxu0 %v180
      %v896 = vpop.f32.mrb[0].mxu0
      %v897 = vadd.f32 0.0, %v896
      %v898 = vpop.f32.mrb[0].mxu0
      %899 = vmatprep.mubr.f32.mxu0 0.0
      %900 = vmatmul.mubr.f32.gmra.mrb[0].mxu0 %v181
      %v901 = vpop.f32.mrb[0].mxu0
      %v902 = vadd.f32 0.0, %v901
      %v903 = vpop.f32.mrb[0].mxu0
      %904 = vmatprep.mubr.f32.mxu0 0.0
      %905 = vmatmul.mubr.f32.gmra.mrb[0].mxu0 %v182
      %v906 = vpop.f32.mrb[0].mxu0
      %v907 = vadd.f32 0.0, %v906
      %v908 = vpop.f32.mrb[0].mxu0
      %909 = vmatprep.mubr.f32.mxu0 0.0
      %910 = vmatmul.mubr.f32.gmra.mrb[0].mxu0 %v183
      %v911 = vpop.f32.mrb[0].mxu0
      %v912 = vadd.f32 0.0, %v911
      %v913 = vpop.f32.mrb[0].mxu0
      %914 = vmatprep.mubr.f32.mxu0 0.0
      %915 = vmatmul.mubr.f32.gmra.mrb[0].mxu0 %v184
      %v916 = vpop.f32.mrb[0].mxu0
      %v917 = vadd.f32 0.0, %v916
      %v918 = vpop.f32.mrb[0].mxu0
      %919 = vmatprep.mubr.f32.mxu0 0.0
      %920 = vmatmul.mubr.f32.gmra.mrb[0].mxu0 %v185
      %v921 = vpop.f32.mrb[0].mxu0
      %v922 = vadd.f32 0.0, %v921
      %v923 = vpop.f32.mrb[0].mxu0
      %924 = vmatprep.mubr.f32.mxu0 0.0
      %925 = vmatmul.mubr.f32.gmra.mrb[0].mxu0 %v186
      %v926 = vpop.f32.mrb[0].mxu0
      %v927 = vadd.f32 0.0, %v926
      %v928 = vpop.f32.mrb[0].mxu0
      %929 = vmatprep.mubr.f32.mxu0 0.0
      %930 = vmatmul.mubr.f32.gmra.mrb[0].mxu0 %v187
      %v931 = vpop.f32.mrb[0].mxu0
      %v932 = vadd.f32 0.0, %v931
      %v933 = vpop.f32.mrb[0].mxu0
      %934 = vmatprep.mubr.f32.mxu0 0.0
      %935 = vmatmul.mubr.f32.gmra.mrb[0].mxu0 %v188
      %v936 = vpop.f32.mrb[0].mxu0
      %v937 = vadd.f32 0.0, %v936
      %v938 = vpop.f32.mrb[0].mxu0
      %939 = vmatprep.mubr.f32.mxu0 0.0
      %940 = vmatmul.mubr.f32.gmra.mrb[0].mxu0 %v189
      %v941 = vpop.f32.mrb[0].mxu0
      %v942 = vadd.f32 0.0, %v941
      %v943 = vpop.f32.mrb[0].mxu0
      %944 = vmatprep.mubr.f32.mxu0 0.0
      %945 = vmatmul.mubr.f32.gmra.mrb[0].mxu0 %v190
      %v946 = vpop.f32.mrb[0].mxu0
      %v947 = vadd.f32 0.0, %v946
      %v948 = vpop.f32.mrb[0].mxu0
      %949 = vmatprep.mubr.f32.mxu0 0.0
      %950 = vmatmul.mubr.f32.gmra.mrb[0].mxu0 %v191
      %v951 = vpop.f32.mrb[0].mxu0
      %v952 = vadd.f32 0.0, %v951
      %v953 = vpop.f32.mrb[0].mxu0
      %954 = vmatprep.mubr.f32.mxu0 0.0
      %955 = vmatmul.mubr.f32.gmra.mrb[0].mxu0 %v192
      %v956 = vpop.f32.mrb[0].mxu0
      %v957 = vadd.f32 0.0, %v956
      %v958 = vpop.f32.mrb[0].mxu0
      %959 = vmatprep.mubr.f32.mxu0 0.0
      %960 = vmatmul.mubr.f32.gmra.mrb[0].mxu0 %v193
      %v961 = vpop.f32.mrb[0].mxu0
      %v962 = vadd.f32 0.0, %v961
      %v963 = vpop.f32.mrb[0].mxu0
      %964 = vmatprep.mubr.f32.mxu0 0.0
      %965 = vmatmul.mubr.f32.gmra.mrb[0].mxu0 %v194
      %v966 = vpop.f32.mrb[0].mxu0
      %v967 = vadd.f32 0.0, %v966
      %v968 = vpop.f32.mrb[0].mxu0
      %969 = vmatprep.mubr.f32.mxu0 0.0
      %970 = vmatmul.mubr.f32.gmra.mrb[0].mxu0 %v195
      %v971 = vpop.f32.mrb[0].mxu0
      %v972 = vadd.f32 0.0, %v971
      %v973 = vpop.f32.mrb[0].mxu0
      %974 = vmatprep.mubr.f32.mxu0 0.0
      %975 = vmatmul.mubr.f32.gmra.mrb[0].mxu0 %v196
      %v976 = vpop.f32.mrb[0].mxu0
      %v977 = vadd.f32 0.0, %v976
      %v978 = vpop.f32.mrb[0].mxu0
      %979 = vmatprep.mubr.f32.mxu0 0.0
      %980 = vmatmul.mubr.f32.gmra.mrb[0].mxu0 %v197
      %v981 = vpop.f32.mrb[0].mxu0
      %v982 = vadd.f32 0.0, %v981
      %v983 = vpop.f32.mrb[0].mxu0
      %984 = vmatprep.mubr.f32.mxu0 0.0
      %985 = vmatmul.mubr.f32.gmra.mrb[0].mxu0 %v198
      %v986 = vpop.f32.mrb[0].mxu0
      %v987 = vadd.f32 0.0, %v986
      %v988 = vpop.f32.mrb[0].mxu0
      %989 = vmatprep.mubr.f32.mxu0 0.0
      %990 = vmatmul.mubr.f32.gmra.mrb[0].mxu0 %v199
      %v991 = vpop.f32.mrb[0].mxu0
      %v992 = vadd.f32 0.0, %v991
      %v993 = vpop.f32.mrb[0].mxu0
      %994 = vmatprep.mubr.f32.mxu0 0.0
      %995 = vmatmul.mubr.f32.gmra.mrb[0].mxu0 %v200
      %v996 = vpop.f32.mrb[0].mxu0
      %v997 = vadd.f32 0.0, %v996
      %v998 = vpop.f32.mrb[0].mxu0
      %999 = vmatprep.mubr.f32.mxu0 0.0
      %1000 = vmatmul.mubr.f32.gmra.mrb[0].mxu0 %v201
      %v1001 = vpop.f32.mrb[0].mxu0
      %v1002 = vadd.f32 0.0, %v1001
      %v1003 = vpop.f32.mrb[0].mxu0
      %1004 = vmatprep.mubr.f32.mxu0 0.0
      %1005 = vmatmul.mubr.f32.gmra.mrb[0].mxu0 %v202
      %v1006 = vpop.f32.mrb[0].mxu0
      %v1007 = vadd.f32 0.0, %v1006
      %v1008 = vpop.f32.mrb[0].mxu0
      %1009 = vmatprep.mubr.f32.mxu0 0.0
      %1010 = vmatmul.mubr.f32.gmra.mrb[0].mxu0 %v203
      %v1011 = vpop.f32.mrb[0].mxu0
      %v1012 = vadd.f32 0.0, %v1011
      %v1013 = vpop.f32.mrb[0].mxu0
      %1014 = vmatprep.mubr.f32.mxu0 0.0
      %1015 = vmatmul.mubr.f32.gmra.mrb[0].mxu0 %v204
      %v1016 = vpop.f32.mrb[0].mxu0
      %v1017 = vadd.f32 0.0, %v1016
      %v1018 = vpop.f32.mrb[0].mxu0
      %1019 = vmatprep.mubr.f32.mxu0 0.0
      %1020 = vmatmul.mubr.f32.gmra.mrb[0].mxu0 %v205
      %v1021 = vpop.f32.mrb[0].mxu0
      %v1022 = vadd.f32 0.0, %v1021
      %v1023 = vpop.f32.mrb[0].mxu0
      %1024 = vdwg.mxu0
      %v1025 = vld [vmem:[%s2] sm:$0x1]
      %v1027 = vlaneseq
      %v1028 = vshrl.u32 %v1027, 7
      %v1029 = vsub.s32 0, %v1028
      %v1030 = vrot.slane %v1025, %v1029
      %v1032 = vadd.f32 %v353, %v1030
      %v1033 = vadd.f32 %v359, %v1030
      %v1034 = vadd.f32 %v365, %v1030
      %v1035 = vadd.f32 %v371, %v1030
      %v1036 = vadd.f32 %v377, %v1030
      %v1037 = vadd.f32 %v383, %v1030
      %v1038 = vadd.f32 %v389, %v1030
      %v1039 = vadd.f32 %v395, %v1030
      %v1040 = vadd.f32 %v401, %v1030
      %v1041 = vadd.f32 %v407, %v1030
      %v1042 = vadd.f32 %v413, %v1030
      %v1043 = vadd.f32 %v419, %v1030
      %v1044 = vadd.f32 %v425, %v1030
      %v1045 = vadd.f32 %v431, %v1030
      %v1046 = vadd.f32 %v437, %v1030
      %v1047 = vadd.f32 %v443, %v1030
      %v1048 = vadd.f32 %v449, %v1030
      %v1049 = vadd.f32 %v455, %v1030
      %v1050 = vadd.f32 %v461, %v1030
      %v1051 = vadd.f32 %v467, %v1030
      %v1052 = vadd.f32 %v473, %v1030
      %v1053 = vadd.f32 %v479, %v1030
      %v1054 = vadd.f32 %v485, %v1030
      %v1055 = vadd.f32 %v491, %v1030
      %v1056 = vadd.f32 %v497, %v1030
      %v1057 = vadd.f32 %v503, %v1030
      %v1058 = vadd.f32 %v509, %v1030
      %v1059 = vadd.f32 %v515, %v1030
      %v1060 = vadd.f32 %v521, %v1030
      %v1061 = vadd.f32 %v527, %v1030
      %v1062 = vadd.f32 %v533, %v1030
      %v1063 = vadd.f32 %v539, %v1030
      %v1064 = vmul.f32 %v355, %v355
      %v1065 = vmul.f32 %v361, %v361
      %v1066 = vmul.f32 %v367, %v367
      %v1067 = vmul.f32 %v373, %v373
      %v1068 = vmul.f32 %v379, %v379
      %v1069 = vmul.f32 %v385, %v385
      %v1070 = vmul.f32 %v391, %v391
      %v1071 = vmul.f32 %v397, %v397
      %v1072 = vmul.f32 %v403, %v403
      %v1073 = vmul.f32 %v409, %v409
      %v1074 = vmul.f32 %v415, %v415
      %v1075 = vmul.f32 %v421, %v421
      %v1076 = vmul.f32 %v427, %v427
      %v1077 = vmul.f32 %v433, %v433
      %v1078 = vmul.f32 %v439, %v439
      %v1079 = vmul.f32 %v445, %v445
      %v1080 = vmul.f32 %v451, %v451
      %v1081 = vmul.f32 %v457, %v457
      %v1082 = vmul.f32 %v463, %v463
      %v1083 = vmul.f32 %v469, %v469
      %v1084 = vmul.f32 %v475, %v475
      %v1085 = vmul.f32 %v481, %v481
      %v1086 = vmul.f32 %v487, %v487
      %v1087 = vmul.f32 %v493, %v493
      %v1088 = vmul.f32 %v499, %v499
      %v1089 = vmul.f32 %v505, %v505
      %v1090 = vmul.f32 %v511, %v511
      %v1091 = vmul.f32 %v517, %v517
      %v1092 = vmul.f32 %v523, %v523
      %v1093 = vmul.f32 %v529, %v529
      %v1094 = vmul.f32 %v535, %v535
      %v1095 = vmul.f32 %v541, %v541
      %v1096 = vadd.f32 %v1032, %v1064
      %v1097 = vadd.f32 %v1033, %v1065
      %v1098 = vadd.f32 %v1034, %v1066
      %v1099 = vadd.f32 %v1035, %v1067
      %v1100 = vadd.f32 %v1036, %v1068
      %v1101 = vadd.f32 %v1037, %v1069
      %v1102 = vadd.f32 %v1038, %v1070
      %v1103 = vadd.f32 %v1039, %v1071
      %v1104 = vadd.f32 %v1040, %v1072
      %v1105 = vadd.f32 %v1041, %v1073
      %v1106 = vadd.f32 %v1042, %v1074
      %v1107 = vadd.f32 %v1043, %v1075
      %v1108 = vadd.f32 %v1044, %v1076
      %v1109 = vadd.f32 %v1045, %v1077
      %v1110 = vadd.f32 %v1046, %v1078
      %v1111 = vadd.f32 %v1047, %v1079
      %v1112 = vadd.f32 %v1048, %v1080
      %v1113 = vadd.f32 %v1049, %v1081
      %v1114 = vadd.f32 %v1050, %v1082
      %v1115 = vadd.f32 %v1051, %v1083
      %v1116 = vadd.f32 %v1052, %v1084
      %v1117 = vadd.f32 %v1053, %v1085
      %v1118 = vadd.f32 %v1054, %v1086
      %v1119 = vadd.f32 %v1055, %v1087
      %v1120 = vadd.f32 %v1056, %v1088
      %v1121 = vadd.f32 %v1057, %v1089
      %v1122 = vadd.f32 %v1058, %v1090
      %v1123 = vadd.f32 %v1059, %v1091
      %v1124 = vadd.f32 %v1060, %v1092
      %v1125 = vadd.f32 %v1061, %v1093
      %v1126 = vadd.f32 %v1062, %v1094
      %v1127 = vadd.f32 %v1063, %v1095
      %v1128 = vmul.f32 %v610, %v610
      %v1129 = vmul.f32 %v616, %v616
      %v1130 = vmul.f32 %v622, %v622
      %v1131 = vmul.f32 %v628, %v628
      %v1132 = vmul.f32 %v634, %v634
      %v1133 = vmul.f32 %v640, %v640
      %v1134 = vmul.f32 %v646, %v646
      %v1135 = vmul.f32 %v652, %v652
      %v1136 = vmul.f32 %v658, %v658
      %v1137 = vmul.f32 %v664, %v664
      %v1138 = vmul.f32 %v670, %v670
      %v1139 = vmul.f32 %v676, %v676
      %v1140 = vmul.f32 %v682, %v682
      %v1141 = vmul.f32 %v688, %v688
      %v1142 = vmul.f32 %v694, %v694
      %v1143 = vmul.f32 %v700, %v700
      %v1144 = vmul.f32 %v706, %v706
      %v1145 = vmul.f32 %v712, %v712
      %v1146 = vmul.f32 %v718, %v718
      %v1147 = vmul.f32 %v724, %v724
      %v1148 = vmul.f32 %v730, %v730
      %v1149 = vmul.f32 %v736, %v736
      %v1150 = vmul.f32 %v742, %v742
      %v1151 = vmul.f32 %v748, %v748
      %v1152 = vmul.f32 %v754, %v754
      %v1153 = vmul.f32 %v760, %v760
      %v1154 = vmul.f32 %v766, %v766
      %v1155 = vmul.f32 %v772, %v772
      %v1156 = vmul.f32 %v778, %v778
      %v1157 = vmul.f32 %v784, %v784
      %v1158 = vmul.f32 %v790, %v790
      %v1159 = vmul.f32 %v796, %v796
      %v1160 = vadd.f32 %v1096, %v1128
      %v1161 = vadd.f32 %v1097, %v1129
      %v1162 = vadd.f32 %v1098, %v1130
      %v1163 = vadd.f32 %v1099, %v1131
      %v1164 = vadd.f32 %v1100, %v1132
      %v1165 = vadd.f32 %v1101, %v1133
      %v1166 = vadd.f32 %v1102, %v1134
      %v1167 = vadd.f32 %v1103, %v1135
      %v1168 = vadd.f32 %v1104, %v1136
      %v1169 = vadd.f32 %v1105, %v1137
      %v1170 = vadd.f32 %v1106, %v1138
      %v1171 = vadd.f32 %v1107, %v1139
      %v1172 = vadd.f32 %v1108, %v1140
      %v1173 = vadd.f32 %v1109, %v1141
      %v1174 = vadd.f32 %v1110, %v1142
      %v1175 = vadd.f32 %v1111, %v1143
      %v1176 = vadd.f32 %v1112, %v1144
      %v1177 = vadd.f32 %v1113, %v1145
      %v1178 = vadd.f32 %v1114, %v1146
      %v1179 = vadd.f32 %v1115, %v1147
      %v1180 = vadd.f32 %v1116, %v1148
      %v1181 = vadd.f32 %v1117, %v1149
      %v1182 = vadd.f32 %v1118, %v1150
      %v1183 = vadd.f32 %v1119, %v1151
      %v1184 = vadd.f32 %v1120, %v1152
      %v1185 = vadd.f32 %v1121, %v1153
      %v1186 = vadd.f32 %v1122, %v1154
      %v1187 = vadd.f32 %v1123, %v1155
      %v1188 = vadd.f32 %v1124, %v1156
      %v1189 = vadd.f32 %v1125, %v1157
      %v1190 = vadd.f32 %v1126, %v1158
      %v1191 = vadd.f32 %v1127, %v1159
      %v1192 = vmul.f32 %v612, %v612
      %v1193 = vmul.f32 %v618, %v618
      %v1194 = vmul.f32 %v624, %v624
      %v1195 = vmul.f32 %v630, %v630
      %v1196 = vmul.f32 %v636, %v636
      %v1197 = vmul.f32 %v642, %v642
      %v1198 = vmul.f32 %v648, %v648
      %v1199 = vmul.f32 %v654, %v654
      %v1200 = vmul.f32 %v660, %v660
      %v1201 = vmul.f32 %v666, %v666
      %v1202 = vmul.f32 %v672, %v672
      %v1203 = vmul.f32 %v678, %v678
      %v1204 = vmul.f32 %v684, %v684
      %v1205 = vmul.f32 %v690, %v690
      %v1206 = vmul.f32 %v696, %v696
      %v1207 = vmul.f32 %v702, %v702
      %v1208 = vmul.f32 %v708, %v708
      %v1209 = vmul.f32 %v714, %v714
      %v1210 = vmul.f32 %v720, %v720
      %v1211 = vmul.f32 %v726, %v726
      %v1212 = vmul.f32 %v732, %v732
      %v1213 = vmul.f32 %v738, %v738
      %v1214 = vmul.f32 %v744, %v744
      %v1215 = vmul.f32 %v750, %v750
      %v1216 = vmul.f32 %v756, %v756
      %v1217 = vmul.f32 %v762, %v762
      %v1218 = vmul.f32 %v768, %v768
      %v1219 = vmul.f32 %v774, %v774
      %v1220 = vmul.f32 %v780, %v780
      %v1221 = vmul.f32 %v786, %v786
      %v1222 = vmul.f32 %v792, %v792
      %v1223 = vmul.f32 %v798, %v798
      %v1224 = vadd.f32 %v1160, %v1192
      %v1225 = vadd.f32 %v1161, %v1193
      %v1226 = vadd.f32 %v1162, %v1194
      %v1227 = vadd.f32 %v1163, %v1195
      %v1228 = vadd.f32 %v1164, %v1196
      %v1229 = vadd.f32 %v1165, %v1197
      %v1230 = vadd.f32 %v1166, %v1198
      %v1231 = vadd.f32 %v1167, %v1199
      %v1232 = vadd.f32 %v1168, %v1200
      %v1233 = vadd.f32 %v1169, %v1201
      %v1234 = vadd.f32 %v1170, %v1202
      %v1235 = vadd.f32 %v1171, %v1203
      %v1236 = vadd.f32 %v1172, %v1204
      %v1237 = vadd.f32 %v1173, %v1205
      %v1238 = vadd.f32 %v1174, %v1206
      %v1239 = vadd.f32 %v1175, %v1207
      %v1240 = vadd.f32 %v1176, %v1208
      %v1241 = vadd.f32 %v1177, %v1209
      %v1242 = vadd.f32 %v1178, %v1210
      %v1243 = vadd.f32 %v1179, %v1211
      %v1244 = vadd.f32 %v1180, %v1212
      %v1245 = vadd.f32 %v1181, %v1213
      %v1246 = vadd.f32 %v1182, %v1214
      %v1247 = vadd.f32 %v1183, %v1215
      %v1248 = vadd.f32 %v1184, %v1216
      %v1249 = vadd.f32 %v1185, %v1217
      %v1250 = vadd.f32 %v1186, %v1218
      %v1251 = vadd.f32 %v1187, %v1219
      %v1252 = vadd.f32 %v1188, %v1220
      %v1253 = vadd.f32 %v1189, %v1221
      %v1254 = vadd.f32 %v1190, %v1222
      %v1255 = vadd.f32 %v1191, %v1223
      %v1256 = vmul.f32 %v867, %v867
      %v1257 = vmul.f32 %v872, %v872
      %v1258 = vmul.f32 %v877, %v877
      %v1259 = vmul.f32 %v882, %v882
      %v1260 = vmul.f32 %v887, %v887
      %v1261 = vmul.f32 %v892, %v892
      %v1262 = vmul.f32 %v897, %v897
      %v1263 = vmul.f32 %v902, %v902
      %v1264 = vmul.f32 %v907, %v907
      %v1265 = vmul.f32 %v912, %v912
      %v1266 = vmul.f32 %v917, %v917
      %v1267 = vmul.f32 %v922, %v922
      %v1268 = vmul.f32 %v927, %v927
      %v1269 = vmul.f32 %v932, %v932
      %v1270 = vmul.f32 %v937, %v937
      %v1271 = vmul.f32 %v942, %v942
      %v1272 = vmul.f32 %v947, %v947
      %v1273 = vmul.f32 %v952, %v952
      %v1274 = vmul.f32 %v957, %v957
      %v1275 = vmul.f32 %v962, %v962
      %v1276 = vmul.f32 %v967, %v967
      %v1277 = vmul.f32 %v972, %v972
      %v1278 = vmul.f32 %v977, %v977
      %v1279 = vmul.f32 %v982, %v982
      %v1280 = vmul.f32 %v987, %v987
      %v1281 = vmul.f32 %v992, %v992
      %v1282 = vmul.f32 %v997, %v997
      %v1283 = vmul.f32 %v1002, %v1002
      %v1284 = vmul.f32 %v1007, %v1007
      %v1285 = vmul.f32 %v1012, %v1012
      %v1286 = vmul.f32 %v1017, %v1017
      %v1287 = vmul.f32 %v1022, %v1022
      %v1288 = vadd.f32 %v1224, %v1256
      %v1289 = vadd.f32 %v1225, %v1257
      %v1290 = vadd.f32 %v1226, %v1258
      %v1291 = vadd.f32 %v1227, %v1259
      %v1292 = vadd.f32 %v1228, %v1260
      %v1293 = vadd.f32 %v1229, %v1261
      %v1294 = vadd.f32 %v1230, %v1262
      %v1295 = vadd.f32 %v1231, %v1263
      %v1296 = vadd.f32 %v1232, %v1264
      %v1297 = vadd.f32 %v1233, %v1265
      %v1298 = vadd.f32 %v1234, %v1266
      %v1299 = vadd.f32 %v1235, %v1267
      %v1300 = vadd.f32 %v1236, %v1268
      %v1301 = vadd.f32 %v1237, %v1269
      %v1302 = vadd.f32 %v1238, %v1270
      %v1303 = vadd.f32 %v1239, %v1271
      %v1304 = vadd.f32 %v1240, %v1272
      %v1305 = vadd.f32 %v1241, %v1273
      %v1306 = vadd.f32 %v1242, %v1274
      %v1307 = vadd.f32 %v1243, %v1275
      %v1308 = vadd.f32 %v1244, %v1276
      %v1309 = vadd.f32 %v1245, %v1277
      %v1310 = vadd.f32 %v1246, %v1278
      %v1311 = vadd.f32 %v1247, %v1279
      %v1312 = vadd.f32 %v1248, %v1280
      %v1313 = vadd.f32 %v1249, %v1281
      %v1314 = vadd.f32 %v1250, %v1282
      %v1315 = vadd.f32 %v1251, %v1283
      %v1316 = vadd.f32 %v1252, %v1284
      %v1317 = vadd.f32 %v1253, %v1285
      %v1318 = vadd.f32 %v1254, %v1286
      %v1319 = vadd.f32 %v1255, %v1287
      %1320 = vst [vmem:[%s172] sm:$0xff] %v1288
      %1321 = vst [vmem:[%s172 + $0x8] sm:$0xff] %v1289
      %1322 = vst [vmem:[%s172 + $0x10] sm:$0xff] %v1290
      %1323 = vst [vmem:[%s172 + $0x18] sm:$0xff] %v1291
      %1324 = vst [vmem:[%s172 + $0x20] sm:$0xff] %v1292
      %1325 = vst [vmem:[%s172 + $0x28] sm:$0xff] %v1293
      %1326 = vst [vmem:[%s172 + $0x30] sm:$0xff] %v1294
      %1327 = vst [vmem:[%s172 + $0x38] sm:$0xff] %v1295
      %1328 = vst [vmem:[%s172 + $0x40] sm:$0xff] %v1296
      %1329 = vst [vmem:[%s172 + $0x48] sm:$0xff] %v1297
      %1330 = vst [vmem:[%s172 + $0x50] sm:$0xff] %v1298
      %1331 = vst [vmem:[%s172 + $0x58] sm:$0xff] %v1299
      %1332 = vst [vmem:[%s172 + $0x60] sm:$0xff] %v1300
      %1333 = vst [vmem:[%s172 + $0x68] sm:$0xff] %v1301
      %1334 = vst [vmem:[%s172 + $0x70] sm:$0xff] %v1302
      %1335 = vst [vmem:[%s172 + $0x78] sm:$0xff] %v1303
      %1336 = vst [vmem:[%s172 + $0x80] sm:$0xff] %v1304
      %1337 = vst [vmem:[%s172 + $0x88] sm:$0xff] %v1305
      %1338 = vst [vmem:[%s172 + $0x90] sm:$0xff] %v1306
      %1339 = vst [vmem:[%s172 + $0x98] sm:$0xff] %v1307
      %1340 = vst [vmem:[%s172 + $0xa0] sm:$0xff] %v1308
      %1341 = vst [vmem:[%s172 + $0xa8] sm:$0xff] %v1309
      %1342 = vst [vmem:[%s172 + $0xb0] sm:$0xff] %v1310
      %1343 = vst [vmem:[%s172 + $0xb8] sm:$0xff] %v1311
      %1344 = vst [vmem:[%s172 + $0xc0] sm:$0xff] %v1312
      %1345 = vst [vmem:[%s172 + $0xc8] sm:$0xff] %v1313
      %1346 = vst [vmem:[%s172 + $0xd0] sm:$0xff] %v1314
      %1347 = vst [vmem:[%s172 + $0xd8] sm:$0xff] %v1315
      %1348 = vst [vmem:[%s172 + $0xe0] sm:$0xff] %v1316
      %1349 = vst [vmem:[%s172 + $0xe8] sm:$0xff] %v1317
      %1350 = vst [vmem:[%s172 + $0xf0] sm:$0xff] %v1318
      %1351 = vst [vmem:[%s172 + $0xf8] sm:$0xff] %v1319
      %s1352 = smul.u32 32, %s14
      %p1353 = scmp.lt.s32.totalorder %s1352, 63
      %s1354 = scalar_select %p1353, %s1352, 63
      %s1355 = smul.addr %s1354, 8
      %s1356 = scalar_lea.vmem %s3, %s1355
      // Predicated region
      $region33: #{conv2d_convex_quadratic.1} parent=31 // pred_check
        %p1357 = pneg %p100
      $region34: #{conv2d_convex_quadratic.1} parent=31 // pred_check_branch
        %1359 = sbr.rel (%p1357) target = $region36
      $region35: #{conv2d_convex_quadratic.1} parent=31 // pred_region
        %s1360 = smul.u32 32, %s14
      $region36: #{conv2d_convex_quadratic.1} parent=31 // pred_fallthru
        _
    $region32: #{conv2d_convex_quadratic.1} parent=5 // pred_fallthru
      _
    %p1361 = scmp.le.s32.totalorder 2, %s9
    // Predicated region
    $region37: #{conv2d_convex_quadratic.1} parent=5 // pred_check
      %p1362 = pneg %p1361
    $region38: #{conv2d_convex_quadratic.1} parent=5 // pred_check_branch
      %1364 = sbr.rel (%p1362) target = $region40
    $region39: #{conv2d_convex_quadratic.1} parent=5 // pred_region
      %s1365 = ssub.s32 %s9, 2
      // Predicated region
      $region41: #{conv2d_convex_quadratic.1} parent=39 // pred_check
        %p1366 = pneg %p106
      $region42: #{conv2d_convex_quadratic.1} parent=39 // pred_check_branch
        %1368 = sbr.rel (%p1366) target = $region44
      $region43: #{conv2d_convex_quadratic.1} parent=39 // pred_region
        %s1369 = smul.u32 32, %s15
        %p1370 = scmp.lt.s32.totalorder %s1369, 63
        %s1371 = scalar_select %p1370, %s1369, 63
        %s1372 = smul.addr %s1371, 8
        %s1373 = scalar_lea.vmem %s3, %s1372
      $region44: #{conv2d_convex_quadratic.1} parent=39 // pred_fallthru
        _
    $region40: #{conv2d_convex_quadratic.1} parent=5 // pred_fallthru
      _
  $region6: #{conv2d_convex_quadratic.1} parent=0 // loop_footer
    %s13 = sadd.s32 1, %s9
  $region7: #{conv2d_convex_quadratic.1} parent=0 // loop_footer_branch
    %8 = sbr.rel target = $region3
  $region8: #{conv2d_convex_quadratic.1} parent=0 // loop_exit
    _

</llo_original>
